<compile_context>
chip_gen: v7x
topology: tpu7x:2x2x1
jax: 0.10.0
libtpu: 0.0.40
codegen_flags: <defaults>
</compile_context>

<pallas_src>
import jax
import jax.numpy as jnp
from jax import lax
from jax.experimental import pallas as pl
from jax.experimental.pallas import tpu as pltpu

# ----- small, TPU-friendly problem sizes (analogous to the module's globals) -----
NUM_RANKS = 2
BATCH = 2
SEQ_LEN = 8
DIM = 128
MICRO_ITER = 8
DTYPE = jnp.float32


# ---------------------------------------------------------------------------
# Fused forward kernel: per-rank async "all-gather" DMAs overlapped with the
# chained micro_iter linear applications (weight resident in VMEM).
# ---------------------------------------------------------------------------
def _make_fused_forward_kernel(num_ranks, micro_iter):
    def kernel(*refs):
        x_ref, w_ref, b_ref = refs[0], refs[1], refs[2]
        y_hbm = refs[3:3 + num_ranks]
        o_ref, buf_hbm, copy_sem = refs[3 + num_ranks:]

        # Emulated async all_gather: one DMA per rank, buffer[r] <- y[r].
        # All started before the compute chain, all waited after it, so the
        # "communication" HBM traffic hides behind the matmul chain
        # (async_op=True semantics of the original module).
        copies = []
        for r in range(num_ranks):
            cp = pltpu.make_async_copy(y_hbm[r], buf_hbm.at[r], copy_sem.at[r])
            cp.start()
            copies.append(cp)

        w = w_ref[...]                                  # (D, D) resident in VMEM
        m = x_ref.shape[0]
        # Hoisted bias broadcast: built once instead of once per unrolled iteration.
        bias = jnp.broadcast_to(b_ref[...], (m, b_ref.shape[1]))
        x = x_ref[...]                                  # (M, D)

        def body(_, xv):
            return jnp.dot(xv, w, preferred_element_type=jnp.float32) + bias

        x = lax.fori_loop(0, micro_iter, body, x, unroll=True)
        o_ref[...] = x

        for cp in copies:
            cp.wait()

    return kernel


@jax.jit
def fused_forward(x, ys, w, b):
    """x: (B, S, D); ys: tuple of NUM_RANKS arrays of shape (B, S, D); w: (D, D); b: (1, D)."""
    B, S, D = x.shape
    M = B * S
    x2d = x.reshape(M, D)
    num_ranks = len(ys)

    itemsize = jnp.dtype(x.dtype).itemsize
    y_bytes = num_ranks * B * S * D * jnp.dtype(ys[0].dtype).itemsize
    cost = pl.CostEstimate(
        flops=2 * MICRO_ITER * M * D * D,
        transcendentals=0,
        bytes_accessed=(2 * M * D + D * D + D) * itemsize + 2 * y_bytes,
    )

    x_out2d, buffer = pl.pallas_call(
        _make_fused_forward_kernel(num_ranks, MICRO_ITER),
        out_shape=(
            jax.ShapeDtypeStruct((M, D), x.dtype),
            jax.ShapeDtypeStruct((num_ranks, B, S, D), ys[0].dtype),
        ),
        grid_spec=pltpu.PrefetchScalarGridSpec(
            num_scalar_prefetch=0,
            grid=(1,),
            in_specs=[
                pl.BlockSpec((M, D), lambda i: (0, 0)),   # x  -> VMEM once (tm == M)
                pl.BlockSpec((D, D), lambda i: (0, 0)),   # w  -> VMEM once (resident)
                pl.BlockSpec((1, D), lambda i: (0, 0)),   # b  -> VMEM once
            ] + [pl.BlockSpec(memory_space=pl.ANY)] * num_ranks,  # y[r] stay in HBM
            out_specs=(
                pl.BlockSpec((M, D), lambda i: (0, 0)),   # x_out
                pl.BlockSpec(memory_space=pl.ANY),        # buffer stays in HBM (DMA dest)
            ),
            scratch_shapes=[pltpu.SemaphoreType.DMA((num_ranks,))],
        ),
        compiler_params=pltpu.CompilerParams(
            dimension_semantics=("arbitrary",),
        ),
        cost_estimate=cost,
    )(x2d, w, b, *ys)

    return x_out2d.reshape(B, S, D), buffer


# ---------------------------------------------------------------------------
# Module-equivalent wrapper.
# ---------------------------------------------------------------------------
class MatMulNcclPallas:
    def __init__(self, dim, key):
        kw, kb = jax.random.split(key)
        # Deterministic init matching nn.Linear shapes: weight (out, in), bias (out,)
        bound = 1.0 / (dim ** 0.5)
        w_torch_layout = jax.random.uniform(
            kw, (dim, dim), dtype=DTYPE, minval=-bound, maxval=bound
        )
        self.w = jnp.transpose(w_torch_layout)  # (dim_in, dim_out)
        self.b = jax.random.uniform(
            kb, (1, dim), dtype=DTYPE, minval=-bound, maxval=bound
        )
        self.dim = dim

    def forward(self, x, y):
        assert isinstance(y, list)
        # comm_type == 'allgather': buffer[r] <- y[r] for each rank, overlapped with
        # the micro_iter linear applications inside the fused kernel (no jnp.stack:
        # the gather is done by per-rank DMAs directly into the buffer output).
        return fused_forward(x, tuple(y), self.w, self.b)


if __name__ == "__main__":
    key = jax.random.PRNGKey(0)
    k_mod, k_x, k_y = jax.random.split(key, 3)

    mod = MatMulNcclPallas(DIM, k_mod)

    x = jax.random.normal(k_x, (BATCH, SEQ_LEN, DIM), dtype=DTYPE)
    y_keys = jax.random.split(k_y, NUM_RANKS)
    y = [
        jax.random.normal(k, (BATCH, SEQ_LEN, DIM), dtype=DTYPE)
        for k in y_keys
    ]

    x_out, buffer = mod.forward(x, y)
    jax.block_until_ready((x_out, buffer))

    # Correctness check against pure-JAX reference.
    x_ref = x.reshape(-1, DIM)
    for _ in range(MICRO_ITER):
        x_ref = jnp.dot(x_ref, mod.w, preferred_element_type=jnp.float32) + mod.b
    x_ref = x_ref.reshape(BATCH, SEQ_LEN, DIM)
    assert jnp.allclose(x_out, x_ref, atol=1e-3, rtol=1e-3)
    assert jnp.array_equal(buffer, jnp.stack(y, axis=0))

    print("KERNEL_OK")
</pallas_src>

<mosaic_0001>
module attributes {stable_mosaic.version = 11 : i64} {
  func.func @kernel(%arg0: i32, %arg1: memref<16x128xf32, #tpu.memory_space<vmem>>, %arg2: memref<128x128xf32, #tpu.memory_space<vmem>>, %arg3: memref<1x128xf32, #tpu.memory_space<vmem>>, %arg4: memref<2x8x128xf32, #tpu.memory_space<any>>, %arg5: memref<2x8x128xf32, #tpu.memory_space<any>>, %arg6: memref<16x128xf32, #tpu.memory_space<vmem>>, %arg7: memref<2x2x8x128xf32, #tpu.memory_space<any>>, %arg8: memref<2x!tpu.dma_semaphore, #tpu.memory_space<semaphore_mem>>) attributes {dimension_semantics = [#tpu.dimension_semantics<arbitrary>], iteration_bounds = array<i64: 1>, scalar_prefetch = 0 : i64, scratch_operands = 1 : i64, tpu.core_type = #tpu.core_type<tc>, window_params = [{pipeline_mode = #tpu.pipeline_mode<synchronous>, transform_indices = @transform_0, window_bounds = array<i64: 16, 128>}, {pipeline_mode = #tpu.pipeline_mode<synchronous>, transform_indices = @transform_1, window_bounds = array<i64: 128, 128>}, {pipeline_mode = #tpu.pipeline_mode<synchronous>, transform_indices = @transform_2, window_bounds = array<i64: 1, 128>}, {}, {}, {pipeline_mode = #tpu.pipeline_mode<synchronous>, transform_indices = @transform_5, window_bounds = array<i64: 16, 128>}, {}]} {
    %c0_i32 = arith.constant 0 : i32
    %c0_i32_0 = arith.constant 0 : i32
    %c0_i32_1 = arith.constant 0 : i32
    %c0_i32_2 = arith.constant 0 : i32
    %c0_i32_3 = arith.constant 0 : i32
    %0 = tpu.memref_slice %arg7[%c0_i32, %c0_i32_1, %c0_i32_2, %c0_i32_3] : memref<2x2x8x128xf32, #tpu.memory_space<any>> -> memref<1x2x8x128xf32, #tpu.memory_space<any>>
    %1 = tpu.memref_squeeze %0 : memref<1x2x8x128xf32, #tpu.memory_space<any>> -> memref<2x8x128xf32, #tpu.memory_space<any>>
    %2 = tpu.memref_slice %arg8[%c0_i32_0] : memref<2x!tpu.dma_semaphore, #tpu.memory_space<semaphore_mem>> -> memref<1x!tpu.dma_semaphore, #tpu.memory_space<semaphore_mem>>
    %3 = tpu.memref_squeeze %2 : memref<1x!tpu.dma_semaphore, #tpu.memory_space<semaphore_mem>> -> memref<!tpu.dma_semaphore, #tpu.memory_space<semaphore_mem>>
    tpu.enqueue_dma source(%arg4 : memref<2x8x128xf32, #tpu.memory_space<any>>) target(%1 : memref<2x8x128xf32, #tpu.memory_space<any>>) target_semaphore(%3 : memref<!tpu.dma_semaphore, #tpu.memory_space<semaphore_mem>>)
    %c1_i32 = arith.constant 1 : i32
    %c1_i32_4 = arith.constant 1 : i32
    %c0_i32_5 = arith.constant 0 : i32
    %c0_i32_6 = arith.constant 0 : i32
    %c0_i32_7 = arith.constant 0 : i32
    %4 = tpu.memref_slice %arg7[%c1_i32, %c0_i32_5, %c0_i32_6, %c0_i32_7] : memref<2x2x8x128xf32, #tpu.memory_space<any>> -> memref<1x2x8x128xf32, #tpu.memory_space<any>>
    %5 = tpu.memref_squeeze %4 : memref<1x2x8x128xf32, #tpu.memory_space<any>> -> memref<2x8x128xf32, #tpu.memory_space<any>>
    %6 = tpu.memref_slice %arg8[%c1_i32_4] : memref<2x!tpu.dma_semaphore, #tpu.memory_space<semaphore_mem>> -> memref<1x!tpu.dma_semaphore, #tpu.memory_space<semaphore_mem>>
    %7 = tpu.memref_squeeze %6 : memref<1x!tpu.dma_semaphore, #tpu.memory_space<semaphore_mem>> -> memref<!tpu.dma_semaphore, #tpu.memory_space<semaphore_mem>>
    tpu.enqueue_dma source(%arg5 : memref<2x8x128xf32, #tpu.memory_space<any>>) target(%5 : memref<2x8x128xf32, #tpu.memory_space<any>>) target_semaphore(%7 : memref<!tpu.dma_semaphore, #tpu.memory_space<semaphore_mem>>)
    %c0 = arith.constant 0 : index
    %c0_8 = arith.constant 0 : index
    %8 = vector.load %arg2[%c0, %c0_8] : memref<128x128xf32, #tpu.memory_space<vmem>>, vector<128x128xf32>
    %c0_9 = arith.constant 0 : index
    %c0_10 = arith.constant 0 : index
    %9 = vector.load %arg3[%c0_9, %c0_10] : memref<1x128xf32, #tpu.memory_space<vmem>>, vector<1x128xf32>
    %10 = vector.shape_cast %9 : vector<1x128xf32> to vector<1x128xf32>
    %11 = vector.broadcast %10 : vector<1x128xf32> to vector<16x128xf32>
    %c0_11 = arith.constant 0 : index
    %c0_12 = arith.constant 0 : index
    %12 = vector.load %arg1[%c0_11, %c0_12] : memref<16x128xf32, #tpu.memory_space<vmem>>, vector<16x128xf32>
    %c0_i32_13 = arith.constant 0 : i32
    %cst = arith.constant dense<0.000000e+00> : vector<16x128xf32>
    %13 = tpu.matmul %12, %8, %cst {dimension_numbers = #tpu.dot_dimension_numbers<[1], [0], [0], [1], [0, 0, 1, 1], [], []>} : vector<16x128xf32>, vector<128x128xf32>, vector<16x128xf32> -> vector<16x128xf32>
    %14 = arith.addf %13, %11 : vector<16x128xf32>
    %c1_i32_14 = arith.constant 1 : i32
    %cst_15 = arith.constant dense<0.000000e+00> : vector<16x128xf32>
    %15 = tpu.matmul %14, %8, %cst_15 {dimension_numbers = #tpu.dot_dimension_numbers<[1], [0], [0], [1], [0, 0, 1, 1], [], []>} : vector<16x128xf32>, vector<128x128xf32>, vector<16x128xf32> -> vector<16x128xf32>
    %16 = arith.addf %15, %11 : vector<16x128xf32>
    %c2_i32 = arith.constant 2 : i32
    %cst_16 = arith.constant dense<0.000000e+00> : vector<16x128xf32>
    %17 = tpu.matmul %16, %8, %cst_16 {dimension_numbers = #tpu.dot_dimension_numbers<[1], [0], [0], [1], [0, 0, 1, 1], [], []>} : vector<16x128xf32>, vector<128x128xf32>, vector<16x128xf32> -> vector<16x128xf32>
    %18 = arith.addf %17, %11 : vector<16x128xf32>
    %c3_i32 = arith.constant 3 : i32
    %cst_17 = arith.constant dense<0.000000e+00> : vector<16x128xf32>
    %19 = tpu.matmul %18, %8, %cst_17 {dimension_numbers = #tpu.dot_dimension_numbers<[1], [0], [0], [1], [0, 0, 1, 1], [], []>} : vector<16x128xf32>, vector<128x128xf32>, vector<16x128xf32> -> vector<16x128xf32>
    %20 = arith.addf %19, %11 : vector<16x128xf32>
    %c4_i32 = arith.constant 4 : i32
    %cst_18 = arith.constant dense<0.000000e+00> : vector<16x128xf32>
    %21 = tpu.matmul %20, %8, %cst_18 {dimension_numbers = #tpu.dot_dimension_numbers<[1], [0], [0], [1], [0, 0, 1, 1], [], []>} : vector<16x128xf32>, vector<128x128xf32>, vector<16x128xf32> -> vector<16x128xf32>
    %22 = arith.addf %21, %11 : vector<16x128xf32>
    %c5_i32 = arith.constant 5 : i32
    %cst_19 = arith.constant dense<0.000000e+00> : vector<16x128xf32>
    %23 = tpu.matmul %22, %8, %cst_19 {dimension_numbers = #tpu.dot_dimension_numbers<[1], [0], [0], [1], [0, 0, 1, 1], [], []>} : vector<16x128xf32>, vector<128x128xf32>, vector<16x128xf32> -> vector<16x128xf32>
    %24 = arith.addf %23, %11 : vector<16x128xf32>
    %c6_i32 = arith.constant 6 : i32
    %cst_20 = arith.constant dense<0.000000e+00> : vector<16x128xf32>
    %25 = tpu.matmul %24, %8, %cst_20 {dimension_numbers = #tpu.dot_dimension_numbers<[1], [0], [0], [1], [0, 0, 1, 1], [], []>} : vector<16x128xf32>, vector<128x128xf32>, vector<16x128xf32> -> vector<16x128xf32>
    %26 = arith.addf %25, %11 : vector<16x128xf32>
    %c7_i32 = arith.constant 7 : i32
    %cst_21 = arith.constant dense<0.000000e+00> : vector<16x128xf32>
    %27 = tpu.matmul %26, %8, %cst_21 {dimension_numbers = #tpu.dot_dimension_numbers<[1], [0], [0], [1], [0, 0, 1, 1], [], []>} : vector<16x128xf32>, vector<128x128xf32>, vector<16x128xf32> -> vector<16x128xf32>
    %28 = arith.addf %27, %11 : vector<16x128xf32>
    %c0_22 = arith.constant 0 : index
    %c0_23 = arith.constant 0 : index
    %29 = vector.load %arg6[%c0_22, %c0_23] : memref<16x128xf32, #tpu.memory_space<vmem>>, vector<16x128xf32>
    tpu.vector_store %arg6[%c0_22, %c0_23], %28 {strides = array<i32>} : memref<16x128xf32, #tpu.memory_space<vmem>>, vector<16x128xf32>,
    %c0_i32_24 = arith.constant 0 : i32
    %c0_i32_25 = arith.constant 0 : i32
    %c0_i32_26 = arith.constant 0 : i32
    %c0_i32_27 = arith.constant 0 : i32
    %c0_i32_28 = arith.constant 0 : i32
    %30 = tpu.memref_slice %arg7[%c0_i32_24, %c0_i32_26, %c0_i32_27, %c0_i32_28] : memref<2x2x8x128xf32, #tpu.memory_space<any>> -> memref<1x2x8x128xf32, #tpu.memory_space<any>>
    %31 = tpu.memref_squeeze %30 : memref<1x2x8x128xf32, #tpu.memory_space<any>> -> memref<2x8x128xf32, #tpu.memory_space<any>>
    %32 = tpu.memref_slice %arg8[%c0_i32_25] : memref<2x!tpu.dma_semaphore, #tpu.memory_space<semaphore_mem>> -> memref<1x!tpu.dma_semaphore, #tpu.memory_space<semaphore_mem>>
    %33 = tpu.memref_squeeze %32 : memref<1x!tpu.dma_semaphore, #tpu.memory_space<semaphore_mem>> -> memref<!tpu.dma_semaphore, #tpu.memory_space<semaphore_mem>>
    tpu.wait_dma2 semaphore(%33 : memref<!tpu.dma_semaphore, #tpu.memory_space<semaphore_mem>>) src(%arg4 : memref<2x8x128xf32, #tpu.memory_space<any>>) dst(%31 : memref<2x8x128xf32, #tpu.memory_space<any>>)
    %c1_i32_29 = arith.constant 1 : i32
    %c1_i32_30 = arith.constant 1 : i32
    %c0_i32_31 = arith.constant 0 : i32
    %c0_i32_32 = arith.constant 0 : i32
    %c0_i32_33 = arith.constant 0 : i32
    %34 = tpu.memref_slice %arg7[%c1_i32_29, %c0_i32_31, %c0_i32_32, %c0_i32_33] : memref<2x2x8x128xf32, #tpu.memory_space<any>> -> memref<1x2x8x128xf32, #tpu.memory_space<any>>
    %35 = tpu.memref_squeeze %34 : memref<1x2x8x128xf32, #tpu.memory_space<any>> -> memref<2x8x128xf32, #tpu.memory_space<any>>
    %36 = tpu.memref_slice %arg8[%c1_i32_30] : memref<2x!tpu.dma_semaphore, #tpu.memory_space<semaphore_mem>> -> memref<1x!tpu.dma_semaphore, #tpu.memory_space<semaphore_mem>>
    %37 = tpu.memref_squeeze %36 : memref<1x!tpu.dma_semaphore, #tpu.memory_space<semaphore_mem>> -> memref<!tpu.dma_semaphore, #tpu.memory_space<semaphore_mem>>
    tpu.wait_dma2 semaphore(%37 : memref<!tpu.dma_semaphore, #tpu.memory_space<semaphore_mem>>) src(%arg5 : memref<2x8x128xf32, #tpu.memory_space<any>>) dst(%35 : memref<2x8x128xf32, #tpu.memory_space<any>>)
    return
  }
  func.func @transform_0(%arg0: i32) -> (i32, i32) {
    %c0_i32 = arith.constant 0 : i32
    %c0_i32_0 = arith.constant 0 : i32
    %c0_i32_1 = arith.constant 0 : i32
    return %c0_i32, %c0_i32_0 : i32, i32
  }
  func.func @transform_1(%arg0: i32) -> (i32, i32) {
    %c0_i32 = arith.constant 0 : i32
    %c0_i32_0 = arith.constant 0 : i32
    %c0_i32_1 = arith.constant 0 : i32
    return %c0_i32, %c0_i32_0 : i32, i32
  }
  func.func @transform_2(%arg0: i32) -> (i32, i32) {
    %c0_i32 = arith.constant 0 : i32
    %c0_i32_0 = arith.constant 0 : i32
    %c0_i32_1 = arith.constant 0 : i32
    return %c0_i32, %c0_i32_0 : i32, i32
  }
  func.func @transform_5(%arg0: i32) -> (i32, i32) {
    %c0_i32 = arith.constant 0 : i32
    %c0_i32_0 = arith.constant 0 : i32
    %c0_i32_1 = arith.constant 0 : i32
    return %c0_i32, %c0_i32_0 : i32, i32
  }
}

</mosaic_0001>

<llo_original>
// kernel: fused_forward.1
$region0: #{fused_forward.1}
  #allocation0 [shape = 'u32[]', space=smem, size = 0x4, offset = 0x4, fixed_abs, tag = 'smem constant byte address 0x4 - core index']
  #allocation1 [shape = 'u32[144,128]{1,0:T(1,128)}', space=vmem, size = 0x12000, scoped, tag = 'internal scratch']
  #allocation2 [shape = 's32[2]{0}', space=sflag, size = 0x8, scoped, tag = 'scratch operand']
  #allocation9 [shape = 's32[]', space=sflag, size = 0x4, offset = 0, fixed_abs, tag = 'sflag constant byte address 0x0 - dummy sync flag']
  #allocation10 [shape = 'u32[0]{0}', space=smem, size = 0, offset = 0, fixed_abs, tag = 'smem constant byte address 0x0 - null']
  #allocation11 [shape = 's32[]', space=sflag, size = 0x4, offset = 0, fixed_abs, tag = 'sflag constant byte address 0x0 - dummy sync flag']
  #allocation12 [shape = 'u32[0]{0}', space=smem, size = 0, offset = 0, fixed_abs, tag = 'smem constant byte address 0x0 - null']
  %s0 = inlined_call_operand.hbm [shape: f32[16,128], index: 0, kind: input, shape index: {}]
  %s1 = inlined_call_operand.hbm [shape: f32[128,128], index: 1, kind: input, shape index: {}]
  %s2 = inlined_call_operand.vmem [shape: f32[1,128], index: 2, kind: input, shape index: {}]
  %s3 = inlined_call_operand.hbm [shape: f32[2,8,128], index: 3, kind: input, shape index: {}]
  %s4 = inlined_call_operand.hbm [shape: f32[2,8,128], index: 4, kind: input, shape index: {}]
  %s5 = inlined_call_operand.hbm [shape: f32[16,128], index: 5, kind: output, shape index: {0}]
  %s6 = inlined_call_operand.hbm [shape: f32[2,2,8,128], index: 6, kind: output, shape index: {1}]
  %7 = xla_tuple %s5, %s6
  %s8 = sld [smem:[#allocation0]]
  $region30: #{fused_forward.1} parent=0
    _
  %s10 = ssub.s32 1, %s8
  %s11 = scalar_select 0, %s10, %s8
  $region1: #{fused_forward.1} parent=0
    #allocation3 [shape = 'u8[8192]{0}', space=vmem, size = 0x2000, scoped, tag = 'input window, operand 0, single buffered']
    #allocation4 [shape = 's32[1]{0}', space=sflag, size = 0x4, scoped, tag = 'scoped memory for fused_forward.1']
    #allocation5 [shape = 's32[1]{0}', space=sflag, size = 0x4, scoped, tag = 'scoped memory for fused_forward.1']
    #allocation6 [shape = 'u8[65536]{0}', space=vmem, size = 0x10000, scoped, tag = 'input window, operand 1, single buffered']
    #allocation7 [shape = 's32[1]{0}', space=sflag, size = 0x4, scoped, tag = 'scoped memory for fused_forward.1']
    #allocation8 [shape = 'u8[8192]{0}', space=vmem, size = 0x2000, scoped, tag = 'output window, operand 0, single buffered']
    %12 = vsyncpa [#allocation4], 0
    %13 = vsyncpa [#allocation7], 0
    %14 = vsyncpa [#allocation5], 0
    // Predicated region
    $region2: #{fused_forward.1} parent=1 // pred_check
      _
    $region3: #{fused_forward.1} parent=1 // pred_check_branch
      %16 = sbr.rel (0) target = $region5
    $region4: #{fused_forward.1} parent=1 // pred_region
      %s18 = ssub.s32 256, 256
      %19 = vsyncadd [#allocation4], %s18
      %s20 = sshll.u32 [#allocation3], 4
      %s21 = int_to_ptr.vmem [resolvable:$true] %s20
      %26 = dma.hbm_to_vmem [thread:$0]  %s0, 256, %s21, [#allocation4], 128, 128, 8
    $region5: #{fused_forward.1} parent=1 // pred_fallthru
      _
    // Predicated region
    $region6: #{fused_forward.1} parent=1 // pred_check
      _
    $region7: #{fused_forward.1} parent=1 // pred_check_branch
      %28 = sbr.rel (0) target = $region9
    $region8: #{fused_forward.1} parent=1 // pred_region
      %s30 = ssub.s32 2048, 2048
      %31 = vsyncadd [#allocation7], %s30
      %s32 = sshll.u32 [#allocation6], 4
      %s33 = int_to_ptr.vmem [resolvable:$true] %s32
      %38 = dma.hbm_to_vmem [thread:$0]  %s1, 2048, %s33, [#allocation7], 128, 128, 8
    $region9: #{fused_forward.1} parent=1 // pred_fallthru
      _
    // Predicated region
    $region10: #{fused_forward.1} parent=1 // pred_check
      _
    $region11: #{fused_forward.1} parent=1 // pred_check_branch
      %40 = sbr.rel (0) target = $region13
    $region12: #{fused_forward.1} parent=1 // pred_region
      _
    $region13: #{fused_forward.1} parent=1 // pred_fallthru
      _
    // Predicated region
    $region14: #{fused_forward.1} parent=1 // pred_check
      _
    $region15: #{fused_forward.1} parent=1 // pred_check_branch
      %42 = sbr.rel (0) target = $region17
    $region16: #{fused_forward.1} parent=1 // pred_region
      %43 = dma.done [#allocation4], 256
    $region17: #{fused_forward.1} parent=1 // pred_fallthru
      _
    // Predicated region
    $region18: #{fused_forward.1} parent=1 // pred_check
      _
    $region19: #{fused_forward.1} parent=1 // pred_check_branch
      %45 = sbr.rel (0) target = $region21
    $region20: #{fused_forward.1} parent=1 // pred_region
      %46 = dma.done [#allocation7], 2048
    $region21: #{fused_forward.1} parent=1 // pred_fallthru
      _
    %s48 = sshll.u32 1, 14
    %s49 = sxor.u32 4294967295, %s48
    %s52 = sshll.u32 3, 24
    %s53 = sxor.u32 4294967295, %s52
    %s54 = sand.u32 0, %s53
    %s56 = sor.u32 %s54, 0
    %59 = dma.general %s3, 256, %s6, [#allocation2], [#allocation9], [#allocation10], %s56, 0
    %s60 = scalar_lea.hbm %s6, 256
    %s61 = scalar_lea.sflag [#allocation2], 1
    %s63 = sshll.u32 1, 14
    %s64 = sxor.u32 4294967295, %s63
    %s67 = sshll.u32 3, 24
    %s68 = sxor.u32 4294967295, %s67
    %s69 = sand.u32 0, %s68
    %s71 = sor.u32 %s69, 0
    %74 = dma.general %s4, 256, %s60, %s61, [#allocation11], [#allocation12], %s71, 0
    %v75 = vld [vmem:[#allocation6] sm:$0xff]
    %v76 = vld [vmem:[#allocation6 + $0x8] sm:$0xff]
    %v77 = vld [vmem:[#allocation6 + $0x10] sm:$0xff]
    %v78 = vld [vmem:[#allocation6 + $0x18] sm:$0xff]
    %v79 = vld [vmem:[#allocation6 + $0x20] sm:$0xff]
    %v80 = vld [vmem:[#allocation6 + $0x28] sm:$0xff]
    %v81 = vld [vmem:[#allocation6 + $0x30] sm:$0xff]
    %v82 = vld [vmem:[#allocation6 + $0x38] sm:$0xff]
    %v83 = vld [vmem:[#allocation6 + $0x40] sm:$0xff]
    %v84 = vld [vmem:[#allocation6 + $0x48] sm:$0xff]
    %v85 = vld [vmem:[#allocation6 + $0x50] sm:$0xff]
    %v86 = vld [vmem:[#allocation6 + $0x58] sm:$0xff]
    %v87 = vld [vmem:[#allocation6 + $0x60] sm:$0xff]
    %v88 = vld [vmem:[#allocation6 + $0x68] sm:$0xff]
    %v89 = vld [vmem:[#allocation6 + $0x70] sm:$0xff]
    %v90 = vld [vmem:[#allocation6 + $0x78] sm:$0xff]
    %v91 = vld [vmem:[%s2] sm:$0x1]
    %v93 = vlaneseq
    %v94 = vshrl.u32 %v93, 7
    %v95 = vsub.s32 0, %v94
    %v96 = vrot.slane %v91, %v95
    %v98 = vld [vmem:[#allocation3] sm:$0xff]
    %v99 = vld [vmem:[#allocation3 + $0x8] sm:$0xff]
    %100 = vmatprep.subr.mxu0 0.0
    %101 = vmatpush1.msra.mxu0 %v75
    %102 = vmatprep.subr.mxu0 0.0
    %103 = vmatpush1.msra.mxu0 %v76
    %104 = vmatprep.subr.mxu0 0.0
    %105 = vmatpush1.msra.mxu0 %v77
    %106 = vmatprep.subr.mxu0 0.0
    %107 = vmatpush1.msra.mxu0 %v78
    %108 = vmatprep.subr.mxu0 0.0
    %109 = vmatpush1.msra.mxu0 %v79
    %110 = vmatprep.subr.mxu0 0.0
    %111 = vmatpush1.msra.mxu0 %v80
    %112 = vmatprep.subr.mxu0 0.0
    %113 = vmatpush1.msra.mxu0 %v81
    %114 = vmatprep.subr.mxu0 0.0
    %115 = vmatpush1.msra.mxu0 %v82
    %116 = vmatprep.subr.mxu0 0.0
    %117 = vmatpush1.msra.mxu0 %v83
    %118 = vmatprep.subr.mxu0 0.0
    %119 = vmatpush1.msra.mxu0 %v84
    %120 = vmatprep.subr.mxu0 0.0
    %121 = vmatpush1.msra.mxu0 %v85
    %122 = vmatprep.subr.mxu0 0.0
    %123 = vmatpush1.msra.mxu0 %v86
    %124 = vmatprep.subr.mxu0 0.0
    %125 = vmatpush1.msra.mxu0 %v87
    %126 = vmatprep.subr.mxu0 0.0
    %127 = vmatpush1.msra.mxu0 %v88
    %128 = vmatprep.subr.mxu0 0.0
    %129 = vmatpush1.msra.mxu0 %v89
    %130 = vmatprep.subr.mxu0 0.0
    %131 = vmatpush1.msra.mxu0 %v90
    %132 = vmatprep.subr.mxu0 0.0
    %133 = vmatpush1.msra.mxu0 0.0
    %134 = vmatprep.subr.mxu0 0.0
    %135 = vmatpush1.msra.mxu0 0.0
    %136 = vmatprep.subr.mxu0 0.0
    %137 = vmatpush1.msra.mxu0 0.0
    %138 = vmatprep.subr.mxu0 0.0
    %139 = vmatpush1.msra.mxu0 0.0
    %140 = vmatprep.subr.mxu0 0.0
    %141 = vmatpush1.msra.mxu0 0.0
    %142 = vmatprep.subr.mxu0 0.0
    %143 = vmatpush1.msra.mxu0 0.0
    %144 = vmatprep.subr.mxu0 0.0
    %145 = vmatpush1.msra.mxu0 0.0
    %146 = vmatprep.subr.mxu0 0.0
    %147 = vmatpush1.msra.mxu0 0.0
    %148 = vmatprep.subr.mxu0 0.0
    %149 = vmatpush1.msra.mxu0 0.0
    %150 = vmatprep.subr.mxu0 0.0
    %151 = vmatpush1.msra.mxu0 0.0
    %152 = vmatprep.subr.mxu0 0.0
    %153 = vmatpush1.msra.mxu0 0.0
    %154 = vmatprep.subr.mxu0 0.0
    %155 = vmatpush1.msra.mxu0 0.0
    %156 = vmatprep.subr.mxu0 0.0
    %157 = vmatpush1.msra.mxu0 0.0
    %158 = vmatprep.subr.mxu0 0.0
    %159 = vmatpush1.msra.mxu0 0.0
    %160 = vmatprep.subr.mxu0 0.0
    %161 = vmatpush1.msra.mxu0 0.0
    %162 = vmatprep.subr.mxu0 0.0
    %163 = vmatpush1.msra.mxu0 0.0
    %164 = vmatprep.mubr.f32.mxu0 0.0
    %165 = vmatmul.mubr.f32.gmra.mrb[0].mxu0 %v98
    %v166 = vpop.f32.mrb[0].mxu0
    %v167 = vadd.f32 %v96, %v166
    %v168 = vpop.f32.mrb[0].mxu0
    %169 = vmatprep.mubr.f32.mxu0 0.0
    %170 = vmatmul.mubr.f32.gmra.mrb[0].mxu0 %v99
    %v171 = vpop.f32.mrb[0].mxu0
    %v172 = vadd.f32 %v96, %v171
    %v173 = vpop.f32.mrb[0].mxu0
    %174 = vdwg.mxu0
    %175 = vmatprep.subr.mxu0 0.0
    %176 = vmatpush1.msra.mxu0 %v75
    %177 = vmatprep.subr.mxu0 0.0
    %178 = vmatpush1.msra.mxu0 %v76
    %179 = vmatprep.subr.mxu0 0.0
    %180 = vmatpush1.msra.mxu0 %v77
    %181 = vmatprep.subr.mxu0 0.0
    %182 = vmatpush1.msra.mxu0 %v78
    %183 = vmatprep.subr.mxu0 0.0
    %184 = vmatpush1.msra.mxu0 %v79
    %185 = vmatprep.subr.mxu0 0.0
    %186 = vmatpush1.msra.mxu0 %v80
    %187 = vmatprep.subr.mxu0 0.0
    %188 = vmatpush1.msra.mxu0 %v81
    %189 = vmatprep.subr.mxu0 0.0
    %190 = vmatpush1.msra.mxu0 %v82
    %191 = vmatprep.subr.mxu0 0.0
    %192 = vmatpush1.msra.mxu0 %v83
    %193 = vmatprep.subr.mxu0 0.0
    %194 = vmatpush1.msra.mxu0 %v84
    %195 = vmatprep.subr.mxu0 0.0
    %196 = vmatpush1.msra.mxu0 %v85
    %197 = vmatprep.subr.mxu0 0.0
    %198 = vmatpush1.msra.mxu0 %v86
    %199 = vmatprep.subr.mxu0 0.0
    %200 = vmatpush1.msra.mxu0 %v87
    %201 = vmatprep.subr.mxu0 0.0
    %202 = vmatpush1.msra.mxu0 %v88
    %203 = vmatprep.subr.mxu0 0.0
    %204 = vmatpush1.msra.mxu0 %v89
    %205 = vmatprep.subr.mxu0 0.0
    %206 = vmatpush1.msra.mxu0 %v90
    %207 = vmatprep.subr.mxu0 0.0
    %208 = vmatpush1.msra.mxu0 0.0
    %209 = vmatprep.subr.mxu0 0.0
    %210 = vmatpush1.msra.mxu0 0.0
    %211 = vmatprep.subr.mxu0 0.0
    %212 = vmatpush1.msra.mxu0 0.0
    %213 = vmatprep.subr.mxu0 0.0
    %214 = vmatpush1.msra.mxu0 0.0
    %215 = vmatprep.subr.mxu0 0.0
    %216 = vmatpush1.msra.mxu0 0.0
    %217 = vmatprep.subr.mxu0 0.0
    %218 = vmatpush1.msra.mxu0 0.0
    %219 = vmatprep.subr.mxu0 0.0
    %220 = vmatpush1.msra.mxu0 0.0
    %221 = vmatprep.subr.mxu0 0.0
    %222 = vmatpush1.msra.mxu0 0.0
    %223 = vmatprep.subr.mxu0 0.0
    %224 = vmatpush1.msra.mxu0 0.0
    %225 = vmatprep.subr.mxu0 0.0
    %226 = vmatpush1.msra.mxu0 0.0
    %227 = vmatprep.subr.mxu0 0.0
    %228 = vmatpush1.msra.mxu0 0.0
    %229 = vmatprep.subr.mxu0 0.0
    %230 = vmatpush1.msra.mxu0 0.0
    %231 = vmatprep.subr.mxu0 0.0
    %232 = vmatpush1.msra.mxu0 0.0
    %233 = vmatprep.subr.mxu0 0.0
    %234 = vmatpush1.msra.mxu0 0.0
    %235 = vmatprep.subr.mxu0 0.0
    %236 = vmatpush1.msra.mxu0 0.0
    %237 = vmatprep.subr.mxu0 0.0
    %238 = vmatpush1.msra.mxu0 0.0
    %239 = vmatprep.mubr.f32.mxu0 0.0
    %240 = vmatmul.mubr.f32.gmra.mrb[0].mxu0 %v167
    %v241 = vpop.f32.mrb[0].mxu0
    %v242 = vadd.f32 %v96, %v241
    %v243 = vpop.f32.mrb[0].mxu0
    %244 = vmatprep.mubr.f32.mxu0 0.0
    %245 = vmatmul.mubr.f32.gmra.mrb[0].mxu0 %v172
    %v246 = vpop.f32.mrb[0].mxu0
    %v247 = vadd.f32 %v96, %v246
    %v248 = vpop.f32.mrb[0].mxu0
    %249 = vdwg.mxu0
    %250 = vmatprep.subr.mxu0 0.0
    %251 = vmatpush1.msra.mxu0 %v75
    %252 = vmatprep.subr.mxu0 0.0
    %253 = vmatpush1.msra.mxu0 %v76
    %254 = vmatprep.subr.mxu0 0.0
    %255 = vmatpush1.msra.mxu0 %v77
    %256 = vmatprep.subr.mxu0 0.0
    %257 = vmatpush1.msra.mxu0 %v78
    %258 = vmatprep.subr.mxu0 0.0
    %259 = vmatpush1.msra.mxu0 %v79
    %260 = vmatprep.subr.mxu0 0.0
    %261 = vmatpush1.msra.mxu0 %v80
    %262 = vmatprep.subr.mxu0 0.0
    %263 = vmatpush1.msra.mxu0 %v81
    %264 = vmatprep.subr.mxu0 0.0
    %265 = vmatpush1.msra.mxu0 %v82
    %266 = vmatprep.subr.mxu0 0.0
    %267 = vmatpush1.msra.mxu0 %v83
    %268 = vmatprep.subr.mxu0 0.0
    %269 = vmatpush1.msra.mxu0 %v84
    %270 = vmatprep.subr.mxu0 0.0
    %271 = vmatpush1.msra.mxu0 %v85
    %272 = vmatprep.subr.mxu0 0.0
    %273 = vmatpush1.msra.mxu0 %v86
    %274 = vmatprep.subr.mxu0 0.0
    %275 = vmatpush1.msra.mxu0 %v87
    %276 = vmatprep.subr.mxu0 0.0
    %277 = vmatpush1.msra.mxu0 %v88
    %278 = vmatprep.subr.mxu0 0.0
    %279 = vmatpush1.msra.mxu0 %v89
    %280 = vmatprep.subr.mxu0 0.0
    %281 = vmatpush1.msra.mxu0 %v90
    %282 = vmatprep.subr.mxu0 0.0
    %283 = vmatpush1.msra.mxu0 0.0
    %284 = vmatprep.subr.mxu0 0.0
    %285 = vmatpush1.msra.mxu0 0.0
    %286 = vmatprep.subr.mxu0 0.0
    %287 = vmatpush1.msra.mxu0 0.0
    %288 = vmatprep.subr.mxu0 0.0
    %289 = vmatpush1.msra.mxu0 0.0
    %290 = vmatprep.subr.mxu0 0.0
    %291 = vmatpush1.msra.mxu0 0.0
    %292 = vmatprep.subr.mxu0 0.0
    %293 = vmatpush1.msra.mxu0 0.0
    %294 = vmatprep.subr.mxu0 0.0
    %295 = vmatpush1.msra.mxu0 0.0
    %296 = vmatprep.subr.mxu0 0.0
    %297 = vmatpush1.msra.mxu0 0.0
    %298 = vmatprep.subr.mxu0 0.0
    %299 = vmatpush1.msra.mxu0 0.0
    %300 = vmatprep.subr.mxu0 0.0
    %301 = vmatpush1.msra.mxu0 0.0
    %302 = vmatprep.subr.mxu0 0.0
    %303 = vmatpush1.msra.mxu0 0.0
    %304 = vmatprep.subr.mxu0 0.0
    %305 = vmatpush1.msra.mxu0 0.0
    %306 = vmatprep.subr.mxu0 0.0
    %307 = vmatpush1.msra.mxu0 0.0
    %308 = vmatprep.subr.mxu0 0.0
    %309 = vmatpush1.msra.mxu0 0.0
    %310 = vmatprep.subr.mxu0 0.0
    %311 = vmatpush1.msra.mxu0 0.0
    %312 = vmatprep.subr.mxu0 0.0
    %313 = vmatpush1.msra.mxu0 0.0
    %314 = vmatprep.mubr.f32.mxu0 0.0
    %315 = vmatmul.mubr.f32.gmra.mrb[0].mxu0 %v242
    %v316 = vpop.f32.mrb[0].mxu0
    %v317 = vadd.f32 %v96, %v316
    %v318 = vpop.f32.mrb[0].mxu0
    %319 = vmatprep.mubr.f32.mxu0 0.0
    %320 = vmatmul.mubr.f32.gmra.mrb[0].mxu0 %v247
    %v321 = vpop.f32.mrb[0].mxu0
    %v322 = vadd.f32 %v96, %v321
    %v323 = vpop.f32.mrb[0].mxu0
    %324 = vdwg.mxu0
    %325 = vmatprep.subr.mxu0 0.0
    %326 = vmatpush1.msra.mxu0 %v75
    %327 = vmatprep.subr.mxu0 0.0
    %328 = vmatpush1.msra.mxu0 %v76
    %329 = vmatprep.subr.mxu0 0.0
    %330 = vmatpush1.msra.mxu0 %v77
    %331 = vmatprep.subr.mxu0 0.0
    %332 = vmatpush1.msra.mxu0 %v78
    %333 = vmatprep.subr.mxu0 0.0
    %334 = vmatpush1.msra.mxu0 %v79
    %335 = vmatprep.subr.mxu0 0.0
    %336 = vmatpush1.msra.mxu0 %v80
    %337 = vmatprep.subr.mxu0 0.0
    %338 = vmatpush1.msra.mxu0 %v81
    %339 = vmatprep.subr.mxu0 0.0
    %340 = vmatpush1.msra.mxu0 %v82
    %341 = vmatprep.subr.mxu0 0.0
    %342 = vmatpush1.msra.mxu0 %v83
    %343 = vmatprep.subr.mxu0 0.0
    %344 = vmatpush1.msra.mxu0 %v84
    %345 = vmatprep.subr.mxu0 0.0
    %346 = vmatpush1.msra.mxu0 %v85
    %347 = vmatprep.subr.mxu0 0.0
    %348 = vmatpush1.msra.mxu0 %v86
    %349 = vmatprep.subr.mxu0 0.0
    %350 = vmatpush1.msra.mxu0 %v87
    %351 = vmatprep.subr.mxu0 0.0
    %352 = vmatpush1.msra.mxu0 %v88
    %353 = vmatprep.subr.mxu0 0.0
    %354 = vmatpush1.msra.mxu0 %v89
    %355 = vmatprep.subr.mxu0 0.0
    %356 = vmatpush1.msra.mxu0 %v90
    %357 = vmatprep.subr.mxu0 0.0
    %358 = vmatpush1.msra.mxu0 0.0
    %359 = vmatprep.subr.mxu0 0.0
    %360 = vmatpush1.msra.mxu0 0.0
    %361 = vmatprep.subr.mxu0 0.0
    %362 = vmatpush1.msra.mxu0 0.0
    %363 = vmatprep.subr.mxu0 0.0
    %364 = vmatpush1.msra.mxu0 0.0
    %365 = vmatprep.subr.mxu0 0.0
    %366 = vmatpush1.msra.mxu0 0.0
    %367 = vmatprep.subr.mxu0 0.0
    %368 = vmatpush1.msra.mxu0 0.0
    %369 = vmatprep.subr.mxu0 0.0
    %370 = vmatpush1.msra.mxu0 0.0
    %371 = vmatprep.subr.mxu0 0.0
    %372 = vmatpush1.msra.mxu0 0.0
    %373 = vmatprep.subr.mxu0 0.0
    %374 = vmatpush1.msra.mxu0 0.0
    %375 = vmatprep.subr.mxu0 0.0
    %376 = vmatpush1.msra.mxu0 0.0
    %377 = vmatprep.subr.mxu0 0.0
    %378 = vmatpush1.msra.mxu0 0.0
    %379 = vmatprep.subr.mxu0 0.0
    %380 = vmatpush1.msra.mxu0 0.0
    %381 = vmatprep.subr.mxu0 0.0
    %382 = vmatpush1.msra.mxu0 0.0
    %383 = vmatprep.subr.mxu0 0.0
    %384 = vmatpush1.msra.mxu0 0.0
    %385 = vmatprep.subr.mxu0 0.0
    %386 = vmatpush1.msra.mxu0 0.0
    %387 = vmatprep.subr.mxu0 0.0
    %388 = vmatpush1.msra.mxu0 0.0
    %389 = vmatprep.mubr.f32.mxu0 0.0
    %390 = vmatmul.mubr.f32.gmra.mrb[0].mxu0 %v317
    %v391 = vpop.f32.mrb[0].mxu0
    %v392 = vadd.f32 %v96, %v391
    %v393 = vpop.f32.mrb[0].mxu0
    %394 = vmatprep.mubr.f32.mxu0 0.0
    %395 = vmatmul.mubr.f32.gmra.mrb[0].mxu0 %v322
    %v396 = vpop.f32.mrb[0].mxu0
    %v397 = vadd.f32 %v96, %v396
    %v398 = vpop.f32.mrb[0].mxu0
    %399 = vdwg.mxu0
    %400 = vmatprep.subr.mxu0 0.0
    %401 = vmatpush1.msra.mxu0 %v75
    %402 = vmatprep.subr.mxu0 0.0
    %403 = vmatpush1.msra.mxu0 %v76
    %404 = vmatprep.subr.mxu0 0.0
    %405 = vmatpush1.msra.mxu0 %v77
    %406 = vmatprep.subr.mxu0 0.0
    %407 = vmatpush1.msra.mxu0 %v78
    %408 = vmatprep.subr.mxu0 0.0
    %409 = vmatpush1.msra.mxu0 %v79
    %410 = vmatprep.subr.mxu0 0.0
    %411 = vmatpush1.msra.mxu0 %v80
    %412 = vmatprep.subr.mxu0 0.0
    %413 = vmatpush1.msra.mxu0 %v81
    %414 = vmatprep.subr.mxu0 0.0
    %415 = vmatpush1.msra.mxu0 %v82
    %416 = vmatprep.subr.mxu0 0.0
    %417 = vmatpush1.msra.mxu0 %v83
    %418 = vmatprep.subr.mxu0 0.0
    %419 = vmatpush1.msra.mxu0 %v84
    %420 = vmatprep.subr.mxu0 0.0
    %421 = vmatpush1.msra.mxu0 %v85
    %422 = vmatprep.subr.mxu0 0.0
    %423 = vmatpush1.msra.mxu0 %v86
    %424 = vmatprep.subr.mxu0 0.0
    %425 = vmatpush1.msra.mxu0 %v87
    %426 = vmatprep.subr.mxu0 0.0
    %427 = vmatpush1.msra.mxu0 %v88
    %428 = vmatprep.subr.mxu0 0.0
    %429 = vmatpush1.msra.mxu0 %v89
    %430 = vmatprep.subr.mxu0 0.0
    %431 = vmatpush1.msra.mxu0 %v90
    %432 = vmatprep.subr.mxu0 0.0
    %433 = vmatpush1.msra.mxu0 0.0
    %434 = vmatprep.subr.mxu0 0.0
    %435 = vmatpush1.msra.mxu0 0.0
    %436 = vmatprep.subr.mxu0 0.0
    %437 = vmatpush1.msra.mxu0 0.0
    %438 = vmatprep.subr.mxu0 0.0
    %439 = vmatpush1.msra.mxu0 0.0
    %440 = vmatprep.subr.mxu0 0.0
    %441 = vmatpush1.msra.mxu0 0.0
    %442 = vmatprep.subr.mxu0 0.0
    %443 = vmatpush1.msra.mxu0 0.0
    %444 = vmatprep.subr.mxu0 0.0
    %445 = vmatpush1.msra.mxu0 0.0
    %446 = vmatprep.subr.mxu0 0.0
    %447 = vmatpush1.msra.mxu0 0.0
    %448 = vmatprep.subr.mxu0 0.0
    %449 = vmatpush1.msra.mxu0 0.0
    %450 = vmatprep.subr.mxu0 0.0
    %451 = vmatpush1.msra.mxu0 0.0
    %452 = vmatprep.subr.mxu0 0.0
    %453 = vmatpush1.msra.mxu0 0.0
    %454 = vmatprep.subr.mxu0 0.0
    %455 = vmatpush1.msra.mxu0 0.0
    %456 = vmatprep.subr.mxu0 0.0
    %457 = vmatpush1.msra.mxu0 0.0
    %458 = vmatprep.subr.mxu0 0.0
    %459 = vmatpush1.msra.mxu0 0.0
    %460 = vmatprep.subr.mxu0 0.0
    %461 = vmatpush1.msra.mxu0 0.0
    %462 = vmatprep.subr.mxu0 0.0
    %463 = vmatpush1.msra.mxu0 0.0
    %464 = vmatprep.mubr.f32.mxu0 0.0
    %465 = vmatmul.mubr.f32.gmra.mrb[0].mxu0 %v392
    %v466 = vpop.f32.mrb[0].mxu0
    %v467 = vadd.f32 %v96, %v466
    %v468 = vpop.f32.mrb[0].mxu0
    %469 = vmatprep.mubr.f32.mxu0 0.0
    %470 = vmatmul.mubr.f32.gmra.mrb[0].mxu0 %v397
    %v471 = vpop.f32.mrb[0].mxu0
    %v472 = vadd.f32 %v96, %v471
    %v473 = vpop.f32.mrb[0].mxu0
    %474 = vdwg.mxu0
    %475 = vmatprep.subr.mxu0 0.0
    %476 = vmatpush1.msra.mxu0 %v75
    %477 = vmatprep.subr.mxu0 0.0
    %478 = vmatpush1.msra.mxu0 %v76
    %479 = vmatprep.subr.mxu0 0.0
    %480 = vmatpush1.msra.mxu0 %v77
    %481 = vmatprep.subr.mxu0 0.0
    %482 = vmatpush1.msra.mxu0 %v78
    %483 = vmatprep.subr.mxu0 0.0
    %484 = vmatpush1.msra.mxu0 %v79
    %485 = vmatprep.subr.mxu0 0.0
    %486 = vmatpush1.msra.mxu0 %v80
    %487 = vmatprep.subr.mxu0 0.0
    %488 = vmatpush1.msra.mxu0 %v81
    %489 = vmatprep.subr.mxu0 0.0
    %490 = vmatpush1.msra.mxu0 %v82
    %491 = vmatprep.subr.mxu0 0.0
    %492 = vmatpush1.msra.mxu0 %v83
    %493 = vmatprep.subr.mxu0 0.0
    %494 = vmatpush1.msra.mxu0 %v84
    %495 = vmatprep.subr.mxu0 0.0
    %496 = vmatpush1.msra.mxu0 %v85
    %497 = vmatprep.subr.mxu0 0.0
    %498 = vmatpush1.msra.mxu0 %v86
    %499 = vmatprep.subr.mxu0 0.0
    %500 = vmatpush1.msra.mxu0 %v87
    %501 = vmatprep.subr.mxu0 0.0
    %502 = vmatpush1.msra.mxu0 %v88
    %503 = vmatprep.subr.mxu0 0.0
    %504 = vmatpush1.msra.mxu0 %v89
    %505 = vmatprep.subr.mxu0 0.0
    %506 = vmatpush1.msra.mxu0 %v90
    %507 = vmatprep.subr.mxu0 0.0
    %508 = vmatpush1.msra.mxu0 0.0
    %509 = vmatprep.subr.mxu0 0.0
    %510 = vmatpush1.msra.mxu0 0.0
    %511 = vmatprep.subr.mxu0 0.0
    %512 = vmatpush1.msra.mxu0 0.0
    %513 = vmatprep.subr.mxu0 0.0
    %514 = vmatpush1.msra.mxu0 0.0
    %515 = vmatprep.subr.mxu0 0.0
    %516 = vmatpush1.msra.mxu0 0.0
    %517 = vmatprep.subr.mxu0 0.0
    %518 = vmatpush1.msra.mxu0 0.0
    %519 = vmatprep.subr.mxu0 0.0
    %520 = vmatpush1.msra.mxu0 0.0
    %521 = vmatprep.subr.mxu0 0.0
    %522 = vmatpush1.msra.mxu0 0.0
    %523 = vmatprep.subr.mxu0 0.0
    %524 = vmatpush1.msra.mxu0 0.0
    %525 = vmatprep.subr.mxu0 0.0
    %526 = vmatpush1.msra.mxu0 0.0
    %527 = vmatprep.subr.mxu0 0.0
    %528 = vmatpush1.msra.mxu0 0.0
    %529 = vmatprep.subr.mxu0 0.0
    %530 = vmatpush1.msra.mxu0 0.0
    %531 = vmatprep.subr.mxu0 0.0
    %532 = vmatpush1.msra.mxu0 0.0
    %533 = vmatprep.subr.mxu0 0.0
    %534 = vmatpush1.msra.mxu0 0.0
    %535 = vmatprep.subr.mxu0 0.0
    %536 = vmatpush1.msra.mxu0 0.0
    %537 = vmatprep.subr.mxu0 0.0
    %538 = vmatpush1.msra.mxu0 0.0
    %539 = vmatprep.mubr.f32.mxu0 0.0
    %540 = vmatmul.mubr.f32.gmra.mrb[0].mxu0 %v467
    %v541 = vpop.f32.mrb[0].mxu0
    %v542 = vadd.f32 %v96, %v541
    %v543 = vpop.f32.mrb[0].mxu0
    %544 = vmatprep.mubr.f32.mxu0 0.0
    %545 = vmatmul.mubr.f32.gmra.mrb[0].mxu0 %v472
    %v546 = vpop.f32.mrb[0].mxu0
    %v547 = vadd.f32 %v96, %v546
    %v548 = vpop.f32.mrb[0].mxu0
    %549 = vdwg.mxu0
    %550 = vmatprep.subr.mxu0 0.0
    %551 = vmatpush1.msra.mxu0 %v75
    %552 = vmatprep.subr.mxu0 0.0
    %553 = vmatpush1.msra.mxu0 %v76
    %554 = vmatprep.subr.mxu0 0.0
    %555 = vmatpush1.msra.mxu0 %v77
    %556 = vmatprep.subr.mxu0 0.0
    %557 = vmatpush1.msra.mxu0 %v78
    %558 = vmatprep.subr.mxu0 0.0
    %559 = vmatpush1.msra.mxu0 %v79
    %560 = vmatprep.subr.mxu0 0.0
    %561 = vmatpush1.msra.mxu0 %v80
    %562 = vmatprep.subr.mxu0 0.0
    %563 = vmatpush1.msra.mxu0 %v81
    %564 = vmatprep.subr.mxu0 0.0
    %565 = vmatpush1.msra.mxu0 %v82
    %566 = vmatprep.subr.mxu0 0.0
    %567 = vmatpush1.msra.mxu0 %v83
    %568 = vmatprep.subr.mxu0 0.0
    %569 = vmatpush1.msra.mxu0 %v84
    %570 = vmatprep.subr.mxu0 0.0
    %571 = vmatpush1.msra.mxu0 %v85
    %572 = vmatprep.subr.mxu0 0.0
    %573 = vmatpush1.msra.mxu0 %v86
    %574 = vmatprep.subr.mxu0 0.0
    %575 = vmatpush1.msra.mxu0 %v87
    %576 = vmatprep.subr.mxu0 0.0
    %577 = vmatpush1.msra.mxu0 %v88
    %578 = vmatprep.subr.mxu0 0.0
    %579 = vmatpush1.msra.mxu0 %v89
    %580 = vmatprep.subr.mxu0 0.0
    %581 = vmatpush1.msra.mxu0 %v90
    %582 = vmatprep.subr.mxu0 0.0
    %583 = vmatpush1.msra.mxu0 0.0
    %584 = vmatprep.subr.mxu0 0.0
    %585 = vmatpush1.msra.mxu0 0.0
    %586 = vmatprep.subr.mxu0 0.0
    %587 = vmatpush1.msra.mxu0 0.0
    %588 = vmatprep.subr.mxu0 0.0
    %589 = vmatpush1.msra.mxu0 0.0
    %590 = vmatprep.subr.mxu0 0.0
    %591 = vmatpush1.msra.mxu0 0.0
    %592 = vmatprep.subr.mxu0 0.0
    %593 = vmatpush1.msra.mxu0 0.0
    %594 = vmatprep.subr.mxu0 0.0
    %595 = vmatpush1.msra.mxu0 0.0
    %596 = vmatprep.subr.mxu0 0.0
    %597 = vmatpush1.msra.mxu0 0.0
    %598 = vmatprep.subr.mxu0 0.0
    %599 = vmatpush1.msra.mxu0 0.0
    %600 = vmatprep.subr.mxu0 0.0
    %601 = vmatpush1.msra.mxu0 0.0
    %602 = vmatprep.subr.mxu0 0.0
    %603 = vmatpush1.msra.mxu0 0.0
    %604 = vmatprep.subr.mxu0 0.0
    %605 = vmatpush1.msra.mxu0 0.0
    %606 = vmatprep.subr.mxu0 0.0
    %607 = vmatpush1.msra.mxu0 0.0
    %608 = vmatprep.subr.mxu0 0.0
    %609 = vmatpush1.msra.mxu0 0.0
    %610 = vmatprep.subr.mxu0 0.0
    %611 = vmatpush1.msra.mxu0 0.0
    %612 = vmatprep.subr.mxu0 0.0
    %613 = vmatpush1.msra.mxu0 0.0
    %614 = vmatprep.mubr.f32.mxu0 0.0
    %615 = vmatmul.mubr.f32.gmra.mrb[0].mxu0 %v542
    %v616 = vpop.f32.mrb[0].mxu0
    %v617 = vadd.f32 %v96, %v616
    %v618 = vpop.f32.mrb[0].mxu0
    %619 = vmatprep.mubr.f32.mxu0 0.0
    %620 = vmatmul.mubr.f32.gmra.mrb[0].mxu0 %v547
    %v621 = vpop.f32.mrb[0].mxu0
    %v622 = vadd.f32 %v96, %v621
    %v623 = vpop.f32.mrb[0].mxu0
    %624 = vdwg.mxu0
    %625 = vmatprep.subr.mxu0 0.0
    %626 = vmatpush1.msra.mxu0 %v75
    %627 = vmatprep.subr.mxu0 0.0
    %628 = vmatpush1.msra.mxu0 %v76
    %629 = vmatprep.subr.mxu0 0.0
    %630 = vmatpush1.msra.mxu0 %v77
    %631 = vmatprep.subr.mxu0 0.0
    %632 = vmatpush1.msra.mxu0 %v78
    %633 = vmatprep.subr.mxu0 0.0
    %634 = vmatpush1.msra.mxu0 %v79
    %635 = vmatprep.subr.mxu0 0.0
    %636 = vmatpush1.msra.mxu0 %v80
    %637 = vmatprep.subr.mxu0 0.0
    %638 = vmatpush1.msra.mxu0 %v81
    %639 = vmatprep.subr.mxu0 0.0
    %640 = vmatpush1.msra.mxu0 %v82
    %641 = vmatprep.subr.mxu0 0.0
    %642 = vmatpush1.msra.mxu0 %v83
    %643 = vmatprep.subr.mxu0 0.0
    %644 = vmatpush1.msra.mxu0 %v84
    %645 = vmatprep.subr.mxu0 0.0
    %646 = vmatpush1.msra.mxu0 %v85
    %647 = vmatprep.subr.mxu0 0.0
    %648 = vmatpush1.msra.mxu0 %v86
    %649 = vmatprep.subr.mxu0 0.0
    %650 = vmatpush1.msra.mxu0 %v87
    %651 = vmatprep.subr.mxu0 0.0
    %652 = vmatpush1.msra.mxu0 %v88
    %653 = vmatprep.subr.mxu0 0.0
    %654 = vmatpush1.msra.mxu0 %v89
    %655 = vmatprep.subr.mxu0 0.0
    %656 = vmatpush1.msra.mxu0 %v90
    %657 = vmatprep.subr.mxu0 0.0
    %658 = vmatpush1.msra.mxu0 0.0
    %659 = vmatprep.subr.mxu0 0.0
    %660 = vmatpush1.msra.mxu0 0.0
    %661 = vmatprep.subr.mxu0 0.0
    %662 = vmatpush1.msra.mxu0 0.0
    %663 = vmatprep.subr.mxu0 0.0
    %664 = vmatpush1.msra.mxu0 0.0
    %665 = vmatprep.subr.mxu0 0.0
    %666 = vmatpush1.msra.mxu0 0.0
    %667 = vmatprep.subr.mxu0 0.0
    %668 = vmatpush1.msra.mxu0 0.0
    %669 = vmatprep.subr.mxu0 0.0
    %670 = vmatpush1.msra.mxu0 0.0
    %671 = vmatprep.subr.mxu0 0.0
    %672 = vmatpush1.msra.mxu0 0.0
    %673 = vmatprep.subr.mxu0 0.0
    %674 = vmatpush1.msra.mxu0 0.0
    %675 = vmatprep.subr.mxu0 0.0
    %676 = vmatpush1.msra.mxu0 0.0
    %677 = vmatprep.subr.mxu0 0.0
    %678 = vmatpush1.msra.mxu0 0.0
    %679 = vmatprep.subr.mxu0 0.0
    %680 = vmatpush1.msra.mxu0 0.0
    %681 = vmatprep.subr.mxu0 0.0
    %682 = vmatpush1.msra.mxu0 0.0
    %683 = vmatprep.subr.mxu0 0.0
    %684 = vmatpush1.msra.mxu0 0.0
    %685 = vmatprep.subr.mxu0 0.0
    %686 = vmatpush1.msra.mxu0 0.0
    %687 = vmatprep.subr.mxu0 0.0
    %688 = vmatpush1.msra.mxu0 0.0
    %689 = vmatprep.mubr.f32.mxu0 0.0
    %690 = vmatmul.mubr.f32.gmra.mrb[0].mxu0 %v617
    %v691 = vpop.f32.mrb[0].mxu0
    %v692 = vadd.f32 %v96, %v691
    %v693 = vpop.f32.mrb[0].mxu0
    %694 = vmatprep.mubr.f32.mxu0 0.0
    %695 = vmatmul.mubr.f32.gmra.mrb[0].mxu0 %v622
    %v696 = vpop.f32.mrb[0].mxu0
    %v697 = vadd.f32 %v96, %v696
    %v698 = vpop.f32.mrb[0].mxu0
    %699 = vdwg.mxu0
    %700 = vst [vmem:[#allocation8] sm:$0xff] %v692
    %701 = vst [vmem:[#allocation8 + $0x8] sm:$0xff] %v697
    %s702 = smul.u32 2, 8
    %s703 = smul.u32 %s702, 1
    %s704 = sshll.u32 %s703, 4
    %705 = dma.done [#allocation2], %s704
    %s706 = sshll.u32 %s703, 4
    %707 = dma.done %s61, %s706
    // Predicated region
    $region22: #{fused_forward.1} parent=1 // pred_check
      _
    $region23: #{fused_forward.1} parent=1 // pred_check_branch
      %709 = sbr.rel (0) target = $region25
    $region24: #{fused_forward.1} parent=1 // pred_region
      %s711 = ssub.s32 256, 256
      %712 = vsyncadd [#allocation5], %s711
      %s713 = sshll.u32 [#allocation8], 4
      %s714 = int_to_ptr.vmem [resolvable:$true] %s713
      %719 = dma.vmem_to_hbm [thread:$0]  %s714, 256, %s5, [#allocation5], 128, 128, 8
    $region25: #{fused_forward.1} parent=1 // pred_fallthru
      _
    // Predicated region
    $region26: #{fused_forward.1} parent=1 // pred_check
      _
    $region27: #{fused_forward.1} parent=1 // pred_check_branch
      %721 = sbr.rel (0) target = $region29
    $region28: #{fused_forward.1} parent=1 // pred_region
      %722 = dma.done [#allocation5], 256
    $region29: #{fused_forward.1} parent=1 // pred_fallthru
      _
    %723 = vsyncpa [#allocation4], 1
    %724 = vsyncpa [#allocation7], 1
    %725 = vsyncpa [#allocation5], 1
  %726 = vsyncmov [#allocation2]
  %s727 = vpop.sfrf %726
  %p728 = scmp.eq.s32.totalorder %s727, 0
  %p729 = pneg %p728
  %731 = shalt.err (%p729)
  %s732 = scalar_lea.sflag [#allocation2], 1
  %733 = vsyncmov %s732
  %s734 = vpop.sfrf %733
  %p735 = scmp.eq.s32.totalorder %s734, 0
  %p736 = pneg %p735
  %738 = shalt.err (%p736)

</llo_original>
